<compile_context>
chip_gen: v5e
topology: v5e:2x2
jax: 0.10.0
libtpu: 0.0.40
codegen_flags: <defaults>
</compile_context>

<pallas_src>
import jax
import jax.numpy as jnp
from jax.experimental import pallas as pl
from jax.experimental.pallas import tpu as pltpu


def _smear_kernel(d_ref, sub_ref, coeff_ref, out_ref):
    # d_ref:     (1, Tm)  distances, flattened M on the lane axis
    # sub_ref:   (G, 1)   subtracted centers (offsets; zeros if centered)
    # coeff_ref: (G, 1)   -0.5 / widths^2   (or -0.5 / offsets^2 if centered)
    # out_ref:   (G, Tm)
    d = d_ref[...]                              # (1, Tm) sublane stride-0 bcast
    diff = d - sub_ref[...]                     # (G, Tm)
    out_ref[...] = jnp.exp(coeff_ref[...] * diff * diff).astype(out_ref.dtype)


def gaussian_smearing_pallas(distances, offsets, widths, centered=False,
                             tile_lanes=1024, out_dtype=jnp.float32):
    """distances: (B, N_at, N_nbh) -> (B, N_at, N_nbh, G)."""
    B, N_at, N_nbh = distances.shape
    G = offsets.shape[0]
    M = B * N_at * N_nbh

    if not centered:
        coeff = -0.5 / jnp.square(widths.astype(jnp.float32))
        sub = offsets.astype(jnp.float32)
    else:
        # NOTE: matches the PyTorch reference exactly; offsets containing 0
        # (e.g. the default start=0.0) give inf coeff -> 0/NaN outputs, just
        # like torch.  Use start > 0 for centered Gaussians.
        coeff = -0.5 / jnp.square(offsets.astype(jnp.float32))
        sub = jnp.zeros((G,), jnp.float32)

    d_row = distances.reshape(1, M).astype(jnp.float32)   # M on the lane axis
    sub_col = sub.reshape(G, 1)
    coeff_col = coeff.reshape(G, 1)

    # Lane tile: multiple of 128, as large as requested but no larger than M
    # rounded up to the lane width.  (On v7x keep tile_lanes modest enough that
    # the grid retains several steps so both TensorCores get work.)
    m_lanes = ((M + 127) // 128) * 128
    tile = max(128, min(((tile_lanes + 127) // 128) * 128, m_lanes))
    grid_m = pl.cdiv(M, tile)

    out_gm = pl.pallas_call(
        _smear_kernel,
        out_shape=jax.ShapeDtypeStruct((G, M), out_dtype),
        grid_spec=pltpu.PrefetchScalarGridSpec(
            num_scalar_prefetch=0,
            grid=(grid_m,),
            in_specs=[
                pl.BlockSpec((1, tile), lambda i: (0, i)),   # distances tile
                pl.BlockSpec((G, 1), lambda i: (0, 0)),      # sub   (resident)
                pl.BlockSpec((G, 1), lambda i: (0, 0)),      # coeff (resident)
            ],
            out_specs=pl.BlockSpec((G, tile), lambda i: (0, i)),
        ),
        compiler_params=pltpu.CompilerParams(
            dimension_semantics=("parallel",),
        ),
    )(d_row, sub_col, coeff_col)

    # Layout plumbing back to the reference (B, N_at, N_nbh, G) shape.
    return out_gm.T.reshape(B, N_at, N_nbh, G)


class GaussianSmearingPallas:
    """Mirror of the PyTorch GaussianSmearing module (non-trainable buffers)."""

    def __init__(self, start=0.0, stop=5.0, n_gaussians=50, centered=False,
                 trainable=False, out_dtype=jnp.float32):
        # Deterministic parameter init, exactly as in the PyTorch __init__.
        offset = jnp.linspace(start, stop, n_gaussians, dtype=jnp.float32)
        widths = (offset[1] - offset[0]) * jnp.ones_like(offset)
        self.offsets = offset
        self.width = widths
        self.centered = centered
        self.out_dtype = out_dtype
        # TODO(synk): trainable=True (nn.Parameter) has no meaning here; the
        # offsets/widths are plain buffers but are still passed as runtime
        # arrays, so externally updated values are honored.

    def __call__(self, distances):
        return gaussian_smearing_pallas(
            distances, self.offsets, self.width,
            centered=self.centered, out_dtype=self.out_dtype,
        )


if __name__ == "__main__":
    key = jax.random.PRNGKey(0)
    n_gaussians = 50

    def reference(distances, offsets, widths, centered):
        if not centered:
            coeff = -0.5 / jnp.square(widths)
            diff = distances[..., None] - offsets
        else:
            coeff = -0.5 / jnp.square(offsets)
            diff = distances[..., None]
        return jnp.exp(coeff * diff * diff)

    # Case 1: default (non-centered), M = 2*4*16 = 128 (lane-aligned).
    B, N_at, N_nbh = 2, 4, 16
    k1, k2 = jax.random.split(key)
    distances = jax.random.uniform(k1, (B, N_at, N_nbh), jnp.float32, 0.0, 5.0)
    module = GaussianSmearingPallas(start=0.0, stop=5.0,
                                    n_gaussians=n_gaussians, centered=False)
    out = jax.block_until_ready(module(distances))
    ref = reference(distances, module.offsets, module.width, False)
    assert out.shape == (B, N_at, N_nbh, n_gaussians)
    assert jnp.allclose(out, ref, atol=1e-6, rtol=1e-6)

    # Case 2: non-lane-aligned M = 2*3*7 = 42 -> exercises the partial boundary
    # block (no host-side pad or output slice anywhere).
    d2 = jax.random.uniform(k2, (2, 3, 7), jnp.float32, 0.0, 5.0)
    out2 = jax.block_until_ready(module(d2))
    ref2 = reference(d2, module.offsets, module.width, False)
    assert out2.shape == (2, 3, 7, n_gaussians)
    assert jnp.allclose(out2, ref2, atol=1e-6, rtol=1e-6)

    # Case 3: centered=True (start > 0 so coeff stays finite).
    module_c = GaussianSmearingPallas(start=0.5, stop=5.0,
                                      n_gaussians=n_gaussians, centered=True)
    out3 = jax.block_until_ready(module_c(distances))
    ref3 = reference(distances, module_c.offsets, module_c.width, True)
    assert jnp.allclose(out3, ref3, atol=1e-6, rtol=1e-6)

    print("KERNEL_OK")
</pallas_src>

<mosaic_0001>
module attributes {stable_mosaic.version = 11 : i64} {
  func.func @_smear_kernel(%arg0: i32, %arg1: memref<1x128xf32, #tpu.memory_space<vmem>>, %arg2: memref<50x1xf32, #tpu.memory_space<vmem>>, %arg3: memref<50x1xf32, #tpu.memory_space<vmem>>, %arg4: memref<50x128xf32, #tpu.memory_space<vmem>>) attributes {dimension_semantics = [#tpu.dimension_semantics<parallel>], iteration_bounds = array<i64: 1>, scalar_prefetch = 0 : i64, scratch_operands = 0 : i64, tpu.core_type = #tpu.core_type<tc>, window_params = [{transform_indices = @transform_0, window_bounds = array<i64: 1, 128>}, {pipeline_mode = #tpu.pipeline_mode<synchronous>, transform_indices = @transform_1, window_bounds = array<i64: 50, 1>}, {pipeline_mode = #tpu.pipeline_mode<synchronous>, transform_indices = @transform_2, window_bounds = array<i64: 50, 1>}, {transform_indices = @transform_3, window_bounds = array<i64: 50, 128>}]} {
    %c0 = arith.constant 0 : index
    %c0_0 = arith.constant 0 : index
    %0 = vector.load %arg1[%c0, %c0_0] : memref<1x128xf32, #tpu.memory_space<vmem>>, vector<1x128xf32>
    %c0_1 = arith.constant 0 : index
    %c0_2 = arith.constant 0 : index
    %1 = vector.load %arg2[%c0_1, %c0_2] : memref<50x1xf32, #tpu.memory_space<vmem>>, vector<50x1xf32>
    %2 = vector.broadcast %0 : vector<1x128xf32> to vector<50x128xf32>
    %3 = vector.broadcast %1 : vector<50x1xf32> to vector<50x128xf32>
    %4 = arith.subf %2, %3 : vector<50x128xf32>
    %c0_3 = arith.constant 0 : index
    %c0_4 = arith.constant 0 : index
    %5 = vector.load %arg3[%c0_3, %c0_4] : memref<50x1xf32, #tpu.memory_space<vmem>>, vector<50x1xf32>
    %6 = vector.broadcast %5 : vector<50x1xf32> to vector<50x128xf32>
    %7 = arith.mulf %6, %4 : vector<50x128xf32>
    %8 = arith.mulf %7, %4 : vector<50x128xf32>
    %9 = math.exp %8 : vector<50x128xf32>
    %c0_5 = arith.constant 0 : index
    %c0_6 = arith.constant 0 : index
    %10 = vector.load %arg4[%c0_5, %c0_6] : memref<50x128xf32, #tpu.memory_space<vmem>>, vector<50x128xf32>
    tpu.vector_store %arg4[%c0_5, %c0_6], %9 {strides = array<i32>} : memref<50x128xf32, #tpu.memory_space<vmem>>, vector<50x128xf32>,
    return
  }
  func.func @transform_0(%arg0: i32) -> (i32, i32) {
    %c0_i32 = arith.constant 0 : i32
    %c0_i32_0 = arith.constant 0 : i32
    return %c0_i32, %arg0 : i32, i32
  }
  func.func @transform_1(%arg0: i32) -> (i32, i32) {
    %c0_i32 = arith.constant 0 : i32
    %c0_i32_0 = arith.constant 0 : i32
    %c0_i32_1 = arith.constant 0 : i32
    return %c0_i32, %c0_i32_0 : i32, i32
  }
  func.func @transform_2(%arg0: i32) -> (i32, i32) {
    %c0_i32 = arith.constant 0 : i32
    %c0_i32_0 = arith.constant 0 : i32
    %c0_i32_1 = arith.constant 0 : i32
    return %c0_i32, %c0_i32_0 : i32, i32
  }
  func.func @transform_3(%arg0: i32) -> (i32, i32) {
    %c0_i32 = arith.constant 0 : i32
    %c0_i32_0 = arith.constant 0 : i32
    return %c0_i32, %arg0 : i32, i32
  }
}

</mosaic_0001>

<llo_original>
// kernel: tpu_custom_call.1
$region0: #{tpu_custom_call.1}
  #allocation0 [shape = 'u32[]', space=smem, size = 0x4, offset = 0x4, fixed_abs, tag = 'smem constant byte address 0x4 - core index']
  #allocation1 [shape = 'u32[72,128]{1,0:T(1,128)}', space=vmem, size = 0x9000, scoped, tag = 'internal scratch']
  %s0 = inlined_call_operand.vmem [shape: f32[1,128], index: 0, kind: input, shape index: {}]
  %s1 = inlined_call_operand.vmem [shape: f32[50,1], index: 1, kind: input, shape index: {}]
  %s2 = inlined_call_operand.vmem [shape: f32[50,1], index: 2, kind: input, shape index: {}]
  %s3 = inlined_call_operand.hbm [shape: f32[50,128], index: 3, kind: output, shape index: {}]
  %s4 = sld [smem:[#allocation0]]
  $region22: #{tpu_custom_call.1} parent=0
    _
  %s6 = ssub.s32 1, %s4
  %s7 = scalar_select 0, %s6, %s4
  $region1: #{tpu_custom_call.1} parent=0
    #allocation2 [shape = 'u8[28672]{0}', space=vmem, size = 0x7000, scoped, tag = 'output window, operand 0, single buffered']
    #allocation3 [shape = 's32[1]{0}', space=sflag, size = 0x4, scoped, tag = 'scoped memory for tpu_custom_call.1']
    %8 = vsyncpa [#allocation3], 0
    // Predicated region
    $region2: #{tpu_custom_call.1} parent=1 // pred_check
      _
    $region3: #{tpu_custom_call.1} parent=1 // pred_check_branch
      %10 = sbr.rel (0) target = $region5
    $region4: #{tpu_custom_call.1} parent=1 // pred_region
      _
    $region5: #{tpu_custom_call.1} parent=1 // pred_fallthru
      _
    // Predicated region
    $region6: #{tpu_custom_call.1} parent=1 // pred_check
      _
    $region7: #{tpu_custom_call.1} parent=1 // pred_check_branch
      %12 = sbr.rel (0) target = $region9
    $region8: #{tpu_custom_call.1} parent=1 // pred_region
      _
    $region9: #{tpu_custom_call.1} parent=1 // pred_fallthru
      _
    // Predicated region
    $region10: #{tpu_custom_call.1} parent=1 // pred_check
      _
    $region11: #{tpu_custom_call.1} parent=1 // pred_check_branch
      %14 = sbr.rel (0) target = $region13
    $region12: #{tpu_custom_call.1} parent=1 // pred_region
      _
    $region13: #{tpu_custom_call.1} parent=1 // pred_fallthru
      _
    %v15 = vld [vmem:[%s0] sm:$0x1]
    %v16 = vld [vmem:[%s1] sm:$0xff]
    %v17 = vld [vmem:[%s1 + $0x8] sm:$0xff]
    %v18 = vld [vmem:[%s1 + $0x10] sm:$0xff]
    %v19 = vld [vmem:[%s1 + $0x18] sm:$0xff]
    %v20 = vld [vmem:[%s1 + $0x20] sm:$0xff]
    %v21 = vld [vmem:[%s1 + $0x28] sm:$0xff]
    %v22 = vld [vmem:[%s1 + $0x30] sm:$0x3]
    %v24 = vperm.slane %v15, 0
    %27 = vset.pattern.permute.xlu0 0
    %28 = vperm.xlu0 %27, %v16
    %v29 = vpop.permute.xlu0 %28
    %32 = vset.pattern.permute.xlu0 0
    %33 = vperm.xlu0 %32, %v17
    %v34 = vpop.permute.xlu0 %33
    %37 = vset.pattern.permute.xlu0 0
    %38 = vperm.xlu0 %37, %v18
    %v39 = vpop.permute.xlu0 %38
    %42 = vset.pattern.permute.xlu0 0
    %43 = vperm.xlu0 %42, %v19
    %v44 = vpop.permute.xlu0 %43
    %47 = vset.pattern.permute.xlu0 0
    %48 = vperm.xlu0 %47, %v20
    %v49 = vpop.permute.xlu0 %48
    %52 = vset.pattern.permute.xlu0 0
    %53 = vperm.xlu0 %52, %v21
    %v54 = vpop.permute.xlu0 %53
    %57 = vset.pattern.permute.xlu0 0
    %58 = vperm.xlu0 %57, %v22
    %v59 = vpop.permute.xlu0 %58
    %v61 = vsub.f32 %v24, %v29
    %v62 = vsub.f32 %v24, %v34
    %v63 = vsub.f32 %v24, %v39
    %v64 = vsub.f32 %v24, %v44
    %v65 = vsub.f32 %v24, %v49
    %v66 = vsub.f32 %v24, %v54
    %v67 = vsub.f32 %v24, %v59
    %v68 = vld [vmem:[%s2] sm:$0xff]
    %v69 = vld [vmem:[%s2 + $0x8] sm:$0xff]
    %v70 = vld [vmem:[%s2 + $0x10] sm:$0xff]
    %v71 = vld [vmem:[%s2 + $0x18] sm:$0xff]
    %v72 = vld [vmem:[%s2 + $0x20] sm:$0xff]
    %v73 = vld [vmem:[%s2 + $0x28] sm:$0xff]
    %v74 = vld [vmem:[%s2 + $0x30] sm:$0x3]
    %76 = vset.pattern.permute.xlu0 0
    %77 = vperm.xlu0 %76, %v68
    %v78 = vpop.permute.xlu0 %77
    %81 = vset.pattern.permute.xlu0 0
    %82 = vperm.xlu0 %81, %v69
    %v83 = vpop.permute.xlu0 %82
    %86 = vset.pattern.permute.xlu0 0
    %87 = vperm.xlu0 %86, %v70
    %v88 = vpop.permute.xlu0 %87
    %91 = vset.pattern.permute.xlu0 0
    %92 = vperm.xlu0 %91, %v71
    %v93 = vpop.permute.xlu0 %92
    %96 = vset.pattern.permute.xlu0 0
    %97 = vperm.xlu0 %96, %v72
    %v98 = vpop.permute.xlu0 %97
    %101 = vset.pattern.permute.xlu0 0
    %102 = vperm.xlu0 %101, %v73
    %v103 = vpop.permute.xlu0 %102
    %106 = vset.pattern.permute.xlu0 0
    %107 = vperm.xlu0 %106, %v74
    %v108 = vpop.permute.xlu0 %107
    %v110 = vmul.f32 %v78, %v61
    %v111 = vmul.f32 %v83, %v62
    %v112 = vmul.f32 %v88, %v63
    %v113 = vmul.f32 %v93, %v64
    %v114 = vmul.f32 %v98, %v65
    %v115 = vmul.f32 %v103, %v66
    %v116 = vmul.f32 %v108, %v67
    %v117 = vmul.f32 %v110, %v61
    %v118 = vmul.f32 %v111, %v62
    %v119 = vmul.f32 %v112, %v63
    %v120 = vmul.f32 %v113, %v64
    %v121 = vmul.f32 %v114, %v65
    %v122 = vmul.f32 %v115, %v66
    %v123 = vmul.f32 %v116, %v67
    %v124 = vmul.f32 %v117, 1.442695
    %v125 = vpow.pop %v124
    %v126 = vmul.f32 %v118, 1.442695
    %v127 = vpow.pop %v126
    %v128 = vmul.f32 %v119, 1.442695
    %v129 = vpow.pop %v128
    %v130 = vmul.f32 %v120, 1.442695
    %v131 = vpow.pop %v130
    %v132 = vmul.f32 %v121, 1.442695
    %v133 = vpow.pop %v132
    %v134 = vmul.f32 %v122, 1.442695
    %v135 = vpow.pop %v134
    %v136 = vmul.f32 %v123, 1.442695
    %v137 = vpow.pop %v136
    %138 = vst [vmem:[#allocation2] sm:$0xff] %v125
    %139 = vst [vmem:[#allocation2 + $0x8] sm:$0xff] %v127
    %140 = vst [vmem:[#allocation2 + $0x10] sm:$0xff] %v129
    %141 = vst [vmem:[#allocation2 + $0x18] sm:$0xff] %v131
    %142 = vst [vmem:[#allocation2 + $0x20] sm:$0xff] %v133
    %143 = vst [vmem:[#allocation2 + $0x28] sm:$0xff] %v135
    %144 = vst [vmem:[#allocation2 + $0x30] sm:$0x3] %v137
    // Predicated region
    $region14: #{tpu_custom_call.1} parent=1 // pred_check
      _
    $region15: #{tpu_custom_call.1} parent=1 // pred_check_branch
      %146 = sbr.rel (0) target = $region17
    $region16: #{tpu_custom_call.1} parent=1 // pred_region
      %148 = vsyncadd [#allocation3], 0
      %s149 = sshll.u32 [#allocation2], 4
      %s150 = int_to_ptr.vmem [resolvable:$true] %s149
      %s151 = sshll.u32 %s3, 4
      %s152 = int_to_ptr.hbm [resolvable:$true] %s151
      %157 = dma.vmem_to_hbm [thread:$0]  %s150, 896, %s152, [#allocation3], 128, 128, 8
    $region17: #{tpu_custom_call.1} parent=1 // pred_fallthru
      _
    // Predicated region
    $region18: #{tpu_custom_call.1} parent=1 // pred_check
      _
    $region19: #{tpu_custom_call.1} parent=1 // pred_check_branch
      %159 = sbr.rel (0) target = $region21
    $region20: #{tpu_custom_call.1} parent=1 // pred_region
      %161 = dma.done [#allocation3], 896
    $region21: #{tpu_custom_call.1} parent=1 // pred_fallthru
      _
    %162 = vsyncpa [#allocation3], 1

</llo_original>
